<compile_context>
chip_gen: v5e
topology: v5e:2x2
jax: 0.10.0
libtpu: 0.0.40
codegen_flags: <defaults>
</compile_context>

<pallas_src>
import functools

import jax
import jax.numpy as jnp
from jax.experimental import pallas as pl
from jax.experimental.pallas import tpu as pltpu

LANE = 128
NEG_INF = -1e30


def _round_up(x, m):
    return (x + m - 1) // m * m


def _pad2(x, rows, cols, dtype):
    """Zero-pad a 2-D array to (rows, cols) and cast to dtype."""
    out = jnp.zeros((rows, cols), dtype)
    return out.at[: x.shape[0], : x.shape[1]].set(x.astype(dtype))


# --------------------------------------------------------------------------
# Hardware-aware sizing
# --------------------------------------------------------------------------
def _vmem_budget_bytes():
    """~85% of physical per-core VMEM (v7x: 64 MiB, v5e/v6e: 128 MiB)."""
    phys = None
    try:
        phys = int(pltpu.get_tpu_info().vmem_capacity_bytes)
    except Exception:
        phys = None
    if not phys:
        try:
            kind = jax.devices()[0].device_kind.lower()
        except Exception:
            kind = ""
        phys = (64 << 20) if "7" in kind else (128 << 20)
    return int(phys * 0.85)


def _choose_tiling(n, resident_cols, out_cols, vmem_budget):
    """Pick (tm, n_p): largest row tile whose working set fits VMEM.

    Working set per propagation call:
      double-buffered bf16 A_hat row tile   : 2 * tm * n_p * 2
      resident bf16 feature operand          : n_p * resident_cols * 2
      double-buffered output tile (f32 worst): 2 * tm * out_cols * 4
      weights / bias / compiler slack        : ~2 MiB
    N is padded UP to a multiple of tm (padded rows/cols are zero), never a
    fallback to a smaller tile.  tm is capped at ~n_p/2 when the graph is big
    enough so the parallel row-tile grid has >= 2 steps (v7x megacore split).
    """
    n_128 = _round_up(n, LANE)
    tm_cap = max(LANE, (n_128 // 2) // LANE * LANE)
    for tm in (512, 256, 128):
        if tm > tm_cap:
            continue
        n_p = _round_up(n, tm)
        need = (
            2 * tm * n_p * 2
            + n_p * resident_cols * 2
            + 2 * tm * out_cols * 4
            + (2 << 20)
        )
        if need <= vmem_budget:
            return tm, n_p
    return LANE, _round_up(n, LANE)


# --------------------------------------------------------------------------
# Kernels
# --------------------------------------------------------------------------
def _apply_epilogue(z, o_ref, epilogue, n_valid):
    if epilogue == "relu":
        o_ref[...] = jnp.maximum(z, 0.0).astype(o_ref.dtype)
    else:
        # log_softmax over the valid (unpadded) class columns only.
        col = jax.lax.broadcasted_iota(jnp.int32, z.shape, 1)
        z = jnp.where(col < n_valid, z, NEG_INF)
        m = jnp.max(z, axis=1, keepdims=True)
        s = z - m
        lse = jnp.log(jnp.sum(jnp.exp(s), axis=1, keepdims=True))
        o_ref[...] = (s - lse).astype(o_ref.dtype)


def _prop_fused_kernel(a_ref, f_ref, w_ref, b_ref, o_ref, *, epilogue, n_valid):
    """(A_tile @ F) @ W + b, then epilogue.  No recompute across tiles."""
    t = jnp.dot(a_ref[...], f_ref[...], preferred_element_type=jnp.float32)
    z = jnp.dot(t.astype(jnp.bfloat16), w_ref[...], preferred_element_type=jnp.float32)
    _apply_epilogue(z + b_ref[...], o_ref, epilogue, n_valid)


def _prop_kernel(a_ref, f_ref, b_ref, o_ref, *, epilogue, n_valid):
    """A_tile @ F + b, then epilogue.  F is a precomputed (features @ weight)."""
    z = jnp.dot(a_ref[...], f_ref[...], preferred_element_type=jnp.float32)
    _apply_epilogue(z + b_ref[...], o_ref, epilogue, n_valid)


def _matmul_kernel(x_ref, w_ref, o_ref):
    o_ref[...] = jnp.dot(
        x_ref[...], w_ref[...], preferred_element_type=jnp.float32
    ).astype(o_ref.dtype)


def _matmul(x_p, w_p, *, tm, vmem_limit, out_dtype=jnp.bfloat16):
    """Row-tiled X @ W (precompute path): done ONCE, not per adjacency tile."""
    n_p, k_p = x_p.shape
    d_p = w_p.shape[1]
    cost = pl.CostEstimate(
        flops=2 * n_p * k_p * d_p,
        transcendentals=0,
        bytes_accessed=n_p * k_p * 2 + k_p * d_p * 2 + n_p * d_p * 2,
    )
    return pl.pallas_call(
        _matmul_kernel,
        out_shape=jax.ShapeDtypeStruct((n_p, d_p), out_dtype),
        grid=(n_p // tm,),
        in_specs=[
            pl.BlockSpec((tm, k_p), lambda i: (i, 0)),
            pl.BlockSpec((k_p, d_p), lambda i: (0, 0)),
        ],
        out_specs=pl.BlockSpec((tm, d_p), lambda i: (i, 0)),
        compiler_params=pltpu.CompilerParams(
            dimension_semantics=("parallel",),
            vmem_limit_bytes=vmem_limit,
        ),
        cost_estimate=cost,
    )(x_p, w_p)


# --------------------------------------------------------------------------
# One GCNConv layer (+ epilogue)
# --------------------------------------------------------------------------
def _gcn_layer(a_p, feat_p, w_p, b_p, *, tm, epilogue, n_valid, out_dtype, vmem_limit):
    n_p = a_p.shape[0]
    f_p = feat_p.shape[1]
    d_p = w_p.shape[1]
    out_bytes = jnp.dtype(out_dtype).itemsize

    # Both forms below are recompute-free; their FLOP difference is exactly
    # N_p^2 * (f_p - d_p) from the aggregation, so the padded comparison picks
    # the cheaper one (ties are genuinely equal in FLOPs and residency).
    if f_p <= d_p:
        # Fused form: aggregate the narrow feature matrix, then apply W per tile
        # (per-tile W cost is tm*f_p*d_p, i.e. N*f_p*d_p total — no recompute).
        kernel = functools.partial(_prop_fused_kernel, epilogue=epilogue, n_valid=n_valid)
        cost = pl.CostEstimate(
            flops=2 * n_p * n_p * f_p + 2 * n_p * f_p * d_p,
            transcendentals=(n_p * d_p if epilogue == "log_softmax" else 0),
            bytes_accessed=n_p * n_p * 2 + n_p * f_p * 2 + f_p * d_p * 2 + n_p * d_p * out_bytes,
        )
        return pl.pallas_call(
            kernel,
            out_shape=jax.ShapeDtypeStruct((n_p, d_p), out_dtype),
            grid=(n_p // tm,),
            in_specs=[
                pl.BlockSpec((tm, n_p), lambda i: (i, 0)),   # A_hat row tile (streamed)
                pl.BlockSpec((n_p, f_p), lambda i: (0, 0)),  # features: VMEM resident
                pl.BlockSpec((f_p, d_p), lambda i: (0, 0)),  # weight:   VMEM resident
                pl.BlockSpec((1, d_p), lambda i: (0, 0)),    # bias:     VMEM resident
            ],
            out_specs=pl.BlockSpec((tm, d_p), lambda i: (i, 0)),
            compiler_params=pltpu.CompilerParams(
                dimension_semantics=("parallel",),
                vmem_limit_bytes=vmem_limit,
            ),
            cost_estimate=cost,
        )(a_p, feat_p, w_p, b_p)

    # Precompute form: XW = feat @ W once (own tiled matmul), then aggregate the
    # narrow XW.  Shrinks the resident operand from n_p*f_p to n_p*d_p bytes and
    # removes all wide-operand work from the O(grid) propagation loop.
    xw = _matmul(feat_p, w_p, tm=tm, vmem_limit=vmem_limit, out_dtype=jnp.bfloat16)
    kernel = functools.partial(_prop_kernel, epilogue=epilogue, n_valid=n_valid)
    cost = pl.CostEstimate(
        flops=2 * n_p * n_p * d_p,
        transcendentals=(n_p * d_p if epilogue == "log_softmax" else 0),
        bytes_accessed=n_p * n_p * 2 + n_p * d_p * 2 + n_p * d_p * out_bytes,
    )
    return pl.pallas_call(
        kernel,
        out_shape=jax.ShapeDtypeStruct((n_p, d_p), out_dtype),
        grid=(n_p // tm,),
        in_specs=[
            pl.BlockSpec((tm, n_p), lambda i: (i, 0)),   # A_hat row tile (streamed)
            pl.BlockSpec((n_p, d_p), lambda i: (0, 0)),  # XW: VMEM resident (narrow)
            pl.BlockSpec((1, d_p), lambda i: (0, 0)),    # bias
        ],
        out_specs=pl.BlockSpec((tm, d_p), lambda i: (i, 0)),
        compiler_params=pltpu.CompilerParams(
            dimension_semantics=("parallel",),
            vmem_limit_bytes=vmem_limit,
        ),
        cost_estimate=cost,
    )(a_p, xw, b_p)


# --------------------------------------------------------------------------
# Forward pass + glue
# --------------------------------------------------------------------------
def normalized_adjacency_padded(edge_index, n, n_p, dtype=jnp.bfloat16):
    """D^{-1/2}(A+I)D^{-1/2} built directly at the padded size, single cast.

    Padded nodes get no self-loop (zero rows/cols).  NOTE: relies on a
    deduplicated edge_index for the scatter-add to yield a binary adjacency.
    """
    src, dst = edge_index[0], edge_index[1]
    a = jnp.zeros((n_p, n_p), jnp.float32)
    a = a.at[dst, src].add(1.0)                      # message flows src -> dst
    idx = jnp.arange(n)
    a = a.at[idx, idx].add(1.0)                      # self loops, real nodes only
    deg = jnp.sum(a, axis=1)
    d_inv_sqrt = jnp.where(deg > 0, 1.0 / jnp.sqrt(deg), 0.0)
    # Normalization computed in f32; one cast to bf16 (f32 MXU accumulation in
    # the kernels keeps this adequate for inference; keep f32 if bit-closeness
    # to a PyG f32 reference is required).
    return (a * d_inv_sqrt[:, None] * d_inv_sqrt[None, :]).astype(dtype)


def gcn_forward(x, edge_index, w1, b1, w2, b2):
    """log_softmax(A_hat @ relu(A_hat @ X @ W1 + b1) @ W2 + b2, axis=1)."""
    n, f_in = x.shape
    d_hid = w1.shape[1]
    n_out = w2.shape[1]

    f_p = _round_up(f_in, LANE)
    d_p = _round_up(d_hid, LANE)
    o_p = _round_up(n_out, LANE)

    vmem_budget = _vmem_budget_bytes()
    # Widest VMEM-resident operand across both layers given the zero-recompute
    # form each will pick, and the widest (f32 worst case) output tile.
    resident_cols = max(min(f_p, d_p), min(d_p, o_p))
    out_cols = max(d_p, o_p)
    tm, n_p = _choose_tiling(n, resident_cols, out_cols, vmem_budget)

    a_p = normalized_adjacency_padded(edge_index, n, n_p, jnp.bfloat16)
    x_p = _pad2(x, n_p, f_p, jnp.bfloat16)
    w1_p = _pad2(jnp.reshape(w1, (f_in, d_hid)), f_p, d_p, jnp.bfloat16)
    b1_p = _pad2(jnp.reshape(b1, (1, -1)), 1, d_p, jnp.float32)
    w2_p = _pad2(jnp.reshape(w2, (d_hid, n_out)), d_p, o_p, jnp.bfloat16)
    b2_p = _pad2(jnp.reshape(b2, (1, -1)), 1, o_p, jnp.float32)

    # Layer 1: GCNConv(n_input -> dim) + ReLU, hidden kept bf16 for layer 2.
    h_p = _gcn_layer(a_p, x_p, w1_p, b1_p, tm=tm, epilogue="relu",
                     n_valid=d_hid, out_dtype=jnp.bfloat16, vmem_limit=vmem_budget)

    # F.dropout(x, training=self.training): identity at inference time.
    # TODO(synk): training-mode dropout (stochastic mask via pltpu.prng_*) not emitted.

    # Layer 2: GCNConv(dim -> n_output) + masked log_softmax (f32 epilogue).
    out_p = _gcn_layer(a_p, h_p, w2_p, b2_p, tm=tm, epilogue="log_softmax",
                       n_valid=n_out, out_dtype=jnp.float32, vmem_limit=vmem_budget)

    return out_p[:n, :n_out]


def glorot(key, shape):
    fan_in, fan_out = shape
    limit = jnp.sqrt(6.0 / (fan_in + fan_out))
    return jax.random.uniform(key, shape, jnp.float32, -limit, limit)


if __name__ == "__main__":
    # Small deterministic problem: N nodes, n_input features, hidden dim, n_output classes.
    N, n_input, dim, n_output = 16, 8, 32, 4

    key = jax.random.PRNGKey(0)
    kx, kw1, kw2 = jax.random.split(key, 3)

    # Node features
    x = jax.random.normal(kx, (N, n_input), jnp.float32)

    # Deterministic edge_index: undirected ring graph (both directions listed).
    src = jnp.arange(N, dtype=jnp.int32)
    dst = (src + 1) % N
    edge_index = jnp.stack(
        [jnp.concatenate([src, dst]), jnp.concatenate([dst, src])], axis=0
    )  # [2, 2N]

    # GCNConv parameters (deterministic init; PyG uses glorot weights, zero bias).
    w1 = glorot(kw1, (n_input, dim))
    b1 = jnp.zeros((dim,), jnp.float32)
    w2 = glorot(kw2, (dim, n_output))
    b2 = jnp.zeros((n_output,), jnp.float32)

    out = gcn_forward(x, edge_index, w1, b1, w2, b2)
    out = jax.block_until_ready(out)

    # Sanity: shape, finiteness, rows exponentiate-sum to 1.
    assert out.shape == (N, n_output)
    assert bool(jnp.all(jnp.isfinite(out)))
    row_sums = jnp.exp(out).sum(axis=1)
    assert jnp.allclose(row_sums, 1.0, atol=1e-4)

    # Pure-JAX f32 reference (bf16 operands in the kernel => loose tolerance).
    a_ref = normalized_adjacency_padded(edge_index, N, N, jnp.float32)
    h_ref = jnp.maximum(a_ref @ x @ w1 + b1[None, :], 0.0)
    logits_ref = a_ref @ h_ref @ w2 + b2[None, :]
    ref = jax.nn.log_softmax(logits_ref, axis=1)
    assert float(jnp.max(jnp.abs(out - ref))) < 5e-2

    print("KERNEL_OK")
</pallas_src>

<mosaic_0001>
module attributes {stable_mosaic.version = 11 : i64} {
  func.func @_prop_fused_kernel(%arg0: i32, %arg1: memref<128x128xbf16, #tpu.memory_space<vmem>>, %arg2: memref<128x128xbf16, #tpu.memory_space<vmem>>, %arg3: memref<128x128xbf16, #tpu.memory_space<vmem>>, %arg4: memref<1x128xf32, #tpu.memory_space<vmem>>, %arg5: memref<128x128xbf16, #tpu.memory_space<vmem>>) attributes {dimension_semantics = [#tpu.dimension_semantics<parallel>], iteration_bounds = array<i64: 1>, scalar_prefetch = 0 : i64, scratch_operands = 0 : i64, tpu.core_type = #tpu.core_type<tc>, window_params = [{transform_indices = @transform_0, window_bounds = array<i64: 128, 128>}, {pipeline_mode = #tpu.pipeline_mode<synchronous>, transform_indices = @transform_1, window_bounds = array<i64: 128, 128>}, {pipeline_mode = #tpu.pipeline_mode<synchronous>, transform_indices = @transform_2, window_bounds = array<i64: 128, 128>}, {pipeline_mode = #tpu.pipeline_mode<synchronous>, transform_indices = @transform_3, window_bounds = array<i64: 1, 128>}, {transform_indices = @transform_4, window_bounds = array<i64: 128, 128>}]} {
    %c0 = arith.constant 0 : index
    %c0_0 = arith.constant 0 : index
    %0 = vector.load %arg1[%c0, %c0_0] : memref<128x128xbf16, #tpu.memory_space<vmem>>, vector<128x128xbf16>
    %c0_1 = arith.constant 0 : index
    %c0_2 = arith.constant 0 : index
    %1 = vector.load %arg2[%c0_1, %c0_2] : memref<128x128xbf16, #tpu.memory_space<vmem>>, vector<128x128xbf16>
    %cst = arith.constant dense<0.000000e+00> : vector<128x128xf32>
    %2 = tpu.matmul %0, %1, %cst {dimension_numbers = #tpu.dot_dimension_numbers<[1], [0], [0], [1], [0, 0, 1, 1], [], []>} : vector<128x128xbf16>, vector<128x128xbf16>, vector<128x128xf32> -> vector<128x128xf32>
    %3 = arith.truncf %2 : vector<128x128xf32> to vector<128x128xbf16>
    %c0_3 = arith.constant 0 : index
    %c0_4 = arith.constant 0 : index
    %4 = vector.load %arg3[%c0_3, %c0_4] : memref<128x128xbf16, #tpu.memory_space<vmem>>, vector<128x128xbf16>
    %cst_5 = arith.constant dense<0.000000e+00> : vector<128x128xf32>
    %5 = tpu.matmul %3, %4, %cst_5 {dimension_numbers = #tpu.dot_dimension_numbers<[1], [0], [0], [1], [0, 0, 1, 1], [], []>} : vector<128x128xbf16>, vector<128x128xbf16>, vector<128x128xf32> -> vector<128x128xf32>
    %c0_6 = arith.constant 0 : index
    %c0_7 = arith.constant 0 : index
    %6 = vector.load %arg4[%c0_6, %c0_7] : memref<1x128xf32, #tpu.memory_space<vmem>>, vector<1x128xf32>
    %7 = vector.broadcast %6 : vector<1x128xf32> to vector<128x128xf32>
    %8 = arith.addf %5, %7 : vector<128x128xf32>
    %cst_8 = arith.constant 0.000000e+00 : f32
    %9 = vector.broadcast %cst_8 : f32 to vector<128x128xf32>
    %10 = arith.maximumf %8, %9 : vector<128x128xf32>
    %11 = arith.truncf %10 : vector<128x128xf32> to vector<128x128xbf16>
    %c0_9 = arith.constant 0 : index
    %c0_10 = arith.constant 0 : index
    %12 = vector.load %arg5[%c0_9, %c0_10] : memref<128x128xbf16, #tpu.memory_space<vmem>>, vector<128x128xbf16>
    tpu.vector_store %arg5[%c0_9, %c0_10], %11 {strides = array<i32>} : memref<128x128xbf16, #tpu.memory_space<vmem>>, vector<128x128xbf16>,
    return
  }
  func.func @transform_0(%arg0: i32) -> (i32, i32) {
    %c0_i32 = arith.constant 0 : i32
    %c0_i32_0 = arith.constant 0 : i32
    return %arg0, %c0_i32 : i32, i32
  }
  func.func @transform_1(%arg0: i32) -> (i32, i32) {
    %c0_i32 = arith.constant 0 : i32
    %c0_i32_0 = arith.constant 0 : i32
    %c0_i32_1 = arith.constant 0 : i32
    return %c0_i32, %c0_i32_0 : i32, i32
  }
  func.func @transform_2(%arg0: i32) -> (i32, i32) {
    %c0_i32 = arith.constant 0 : i32
    %c0_i32_0 = arith.constant 0 : i32
    %c0_i32_1 = arith.constant 0 : i32
    return %c0_i32, %c0_i32_0 : i32, i32
  }
  func.func @transform_3(%arg0: i32) -> (i32, i32) {
    %c0_i32 = arith.constant 0 : i32
    %c0_i32_0 = arith.constant 0 : i32
    %c0_i32_1 = arith.constant 0 : i32
    return %c0_i32, %c0_i32_0 : i32, i32
  }
  func.func @transform_4(%arg0: i32) -> (i32, i32) {
    %c0_i32 = arith.constant 0 : i32
    %c0_i32_0 = arith.constant 0 : i32
    return %arg0, %c0_i32 : i32, i32
  }
}

</mosaic_0001>

<llo_original>
// kernel: tpu_custom_call.1
$region0: #{tpu_custom_call.1}
  #allocation0 [shape = 'u32[]', space=smem, size = 0x4, offset = 0x4, fixed_abs, tag = 'smem constant byte address 0x4 - core index']
  #allocation1 [shape = 'u32[72,128]{1,0:T(1,128)}', space=vmem, size = 0x9000, scoped, tag = 'internal scratch']
  %s0 = inlined_call_operand.hbm [shape: bf16[128,128], index: 0, kind: input, shape index: {}]
  %s1 = inlined_call_operand.hbm [shape: bf16[128,128], index: 1, kind: input, shape index: {}]
  %s2 = inlined_call_operand.hbm [shape: bf16[128,128], index: 2, kind: input, shape index: {}]
  %s3 = inlined_call_operand.vmem [shape: f32[1,128], index: 3, kind: input, shape index: {}]
  %s4 = inlined_call_operand.hbm [shape: bf16[128,128], index: 4, kind: output, shape index: {}]
  %s5 = sld [smem:[#allocation0]]
  $region38: #{tpu_custom_call.1} parent=0
    _
  %s7 = ssub.s32 1, %s5
  %s8 = scalar_select 0, %s7, %s5
  $region1: #{tpu_custom_call.1} parent=0
    #allocation2 [shape = 'u8[32768]{0}', space=vmem, size = 0x8000, scoped, tag = 'input window, operand 0, single buffered']
    #allocation3 [shape = 's32[1]{0}', space=sflag, size = 0x4, scoped, tag = 'scoped memory for tpu_custom_call.1']
    #allocation4 [shape = 's32[1]{0}', space=sflag, size = 0x4, scoped, tag = 'scoped memory for tpu_custom_call.1']
    #allocation5 [shape = 'u8[32768]{0}', space=vmem, size = 0x8000, scoped, tag = 'input window, operand 1, single buffered']
    #allocation6 [shape = 's32[1]{0}', space=sflag, size = 0x4, scoped, tag = 'scoped memory for tpu_custom_call.1']
    #allocation7 [shape = 'u8[32768]{0}', space=vmem, size = 0x8000, scoped, tag = 'input window, operand 2, single buffered']
    #allocation8 [shape = 'u8[32768]{0}', space=vmem, size = 0x8000, scoped, tag = 'output window, operand 0, single buffered']
    %9 = vsyncpa [#allocation3], 0
    %10 = vsyncpa [#allocation6], 0
    %11 = vsyncpa [#allocation4], 0
    // Predicated region
    $region2: #{tpu_custom_call.1} parent=1 // pred_check
      _
    $region3: #{tpu_custom_call.1} parent=1 // pred_check_branch
      %13 = sbr.rel (0) target = $region5
    $region4: #{tpu_custom_call.1} parent=1 // pred_region
      %15 = vsyncadd [#allocation3], 0
      %s16 = sshll.u32 %s0, 4
      %s17 = int_to_ptr.hbm [resolvable:$true] %s16
      %s18 = sshll.u32 [#allocation2], 4
      %s19 = int_to_ptr.vmem [resolvable:$true] %s18
      %24 = dma.hbm_to_vmem [thread:$0]  %s17, 1024, %s19, [#allocation3], 64, 64, 4
    $region5: #{tpu_custom_call.1} parent=1 // pred_fallthru
      _
    // Predicated region
    $region6: #{tpu_custom_call.1} parent=1 // pred_check
      _
    $region7: #{tpu_custom_call.1} parent=1 // pred_check_branch
      %26 = sbr.rel (0) target = $region9
    $region8: #{tpu_custom_call.1} parent=1 // pred_region
      %28 = vsyncadd [#allocation6], 0
      %s29 = sshll.u32 %s1, 4
      %s30 = int_to_ptr.hbm [resolvable:$true] %s29
      %s31 = sshll.u32 [#allocation5], 4
      %s32 = int_to_ptr.vmem [resolvable:$true] %s31
      %37 = dma.hbm_to_vmem [thread:$0]  %s30, 1024, %s32, [#allocation6], 64, 64, 4
    $region9: #{tpu_custom_call.1} parent=1 // pred_fallthru
      _
    // Predicated region
    $region10: #{tpu_custom_call.1} parent=1 // pred_check
      _
    $region11: #{tpu_custom_call.1} parent=1 // pred_check_branch
      %39 = sbr.rel (0) target = $region13
    $region12: #{tpu_custom_call.1} parent=1 // pred_region
      %41 = vsyncadd [#allocation6], 0
      %s42 = sshll.u32 %s2, 4
      %s43 = int_to_ptr.hbm [resolvable:$true] %s42
      %s44 = sshll.u32 [#allocation7], 4
      %s45 = int_to_ptr.vmem [resolvable:$true] %s44
      %50 = dma.hbm_to_vmem [thread:$0]  %s43, 1024, %s45, [#allocation6], 64, 64, 4
    $region13: #{tpu_custom_call.1} parent=1 // pred_fallthru
      _
    // Predicated region
    $region14: #{tpu_custom_call.1} parent=1 // pred_check
      _
    $region15: #{tpu_custom_call.1} parent=1 // pred_check_branch
      %52 = sbr.rel (0) target = $region17
    $region16: #{tpu_custom_call.1} parent=1 // pred_region
      _
    $region17: #{tpu_custom_call.1} parent=1 // pred_fallthru
      _
    // Predicated region
    $region18: #{tpu_custom_call.1} parent=1 // pred_check
      _
    $region19: #{tpu_custom_call.1} parent=1 // pred_check_branch
      %54 = sbr.rel (0) target = $region21
    $region20: #{tpu_custom_call.1} parent=1 // pred_region
      %56 = dma.done [#allocation3], 1024
    $region21: #{tpu_custom_call.1} parent=1 // pred_fallthru
      _
    // Predicated region
    $region22: #{tpu_custom_call.1} parent=1 // pred_check
      _
    $region23: #{tpu_custom_call.1} parent=1 // pred_check_branch
      %58 = sbr.rel (0) target = $region25
    $region24: #{tpu_custom_call.1} parent=1 // pred_region
      %60 = dma.done [#allocation6], 1024
    $region25: #{tpu_custom_call.1} parent=1 // pred_fallthru
      _
    // Predicated region
    $region26: #{tpu_custom_call.1} parent=1 // pred_check
      _
    $region27: #{tpu_custom_call.1} parent=1 // pred_check_branch
      %62 = sbr.rel (0) target = $region29
    $region28: #{tpu_custom_call.1} parent=1 // pred_region
      %64 = dma.done [#allocation6], 1024
    $region29: #{tpu_custom_call.1} parent=1 // pred_fallthru
      _
    %v65 = vld [vmem:[#allocation2] sm:$0xf]
    %v66 = vld [vmem:[#allocation2 + $0x4] sm:$0xf]
    %v67 = vld [vmem:[#allocation2 + $0x8] sm:$0xf]
    %v68 = vld [vmem:[#allocation2 + $0xc] sm:$0xf]
    %v69 = vld [vmem:[#allocation2 + $0x10] sm:$0xf]
    %v70 = vld [vmem:[#allocation2 + $0x14] sm:$0xf]
    %v71 = vld [vmem:[#allocation2 + $0x18] sm:$0xf]
    %v72 = vld [vmem:[#allocation2 + $0x1c] sm:$0xf]
    %v73 = vld [vmem:[#allocation2 + $0x20] sm:$0xf]
    %v74 = vld [vmem:[#allocation2 + $0x24] sm:$0xf]
    %v75 = vld [vmem:[#allocation2 + $0x28] sm:$0xf]
    %v76 = vld [vmem:[#allocation2 + $0x2c] sm:$0xf]
    %v77 = vld [vmem:[#allocation2 + $0x30] sm:$0xf]
    %v78 = vld [vmem:[#allocation2 + $0x34] sm:$0xf]
    %v79 = vld [vmem:[#allocation2 + $0x38] sm:$0xf]
    %v80 = vld [vmem:[#allocation2 + $0x3c] sm:$0xf]
    %v81 = vld [vmem:[#allocation5] sm:$0xf]
    %v82 = vld [vmem:[#allocation5 + $0x4] sm:$0xf]
    %v83 = vld [vmem:[#allocation5 + $0x8] sm:$0xf]
    %v84 = vld [vmem:[#allocation5 + $0xc] sm:$0xf]
    %v85 = vld [vmem:[#allocation5 + $0x10] sm:$0xf]
    %v86 = vld [vmem:[#allocation5 + $0x14] sm:$0xf]
    %v87 = vld [vmem:[#allocation5 + $0x18] sm:$0xf]
    %v88 = vld [vmem:[#allocation5 + $0x1c] sm:$0xf]
    %v89 = vld [vmem:[#allocation5 + $0x20] sm:$0xf]
    %v90 = vld [vmem:[#allocation5 + $0x24] sm:$0xf]
    %v91 = vld [vmem:[#allocation5 + $0x28] sm:$0xf]
    %v92 = vld [vmem:[#allocation5 + $0x2c] sm:$0xf]
    %v93 = vld [vmem:[#allocation5 + $0x30] sm:$0xf]
    %v94 = vld [vmem:[#allocation5 + $0x34] sm:$0xf]
    %v95 = vld [vmem:[#allocation5 + $0x38] sm:$0xf]
    %v96 = vld [vmem:[#allocation5 + $0x3c] sm:$0xf]
    %v113 = vunpack.c.l.b16 %v65
    %v114 = vunpack.c.l.b16 %v66
    %v115 = vunpack.c.l.b16 %v67
    %v116 = vunpack.c.l.b16 %v68
    %v117 = vunpack.c.l.b16 %v69
    %v118 = vunpack.c.l.b16 %v70
    %v119 = vunpack.c.l.b16 %v71
    %v120 = vunpack.c.l.b16 %v72
    %v121 = vunpack.c.l.b16 %v73
    %v122 = vunpack.c.l.b16 %v74
    %v123 = vunpack.c.l.b16 %v75
    %v124 = vunpack.c.l.b16 %v76
    %v125 = vunpack.c.l.b16 %v77
    %v126 = vunpack.c.l.b16 %v78
    %v127 = vunpack.c.l.b16 %v79
    %v128 = vunpack.c.l.b16 %v80
    %v129 = vpack.c.b16 %v114, %v113
    %v130 = vpack.c.b16 %v116, %v115
    %v131 = vpack.c.b16 %v118, %v117
    %v132 = vpack.c.b16 %v120, %v119
    %v133 = vpack.c.b16 %v122, %v121
    %v134 = vpack.c.b16 %v124, %v123
    %v135 = vpack.c.b16 %v126, %v125
    %v136 = vpack.c.b16 %v128, %v127
    %v161 = vunpack.c.l.b16 %v81
    %v162 = vunpack.c.l.b16 %v82
    %v163 = vunpack.c.l.b16 %v83
    %v164 = vunpack.c.l.b16 %v84
    %v165 = vunpack.c.l.b16 %v85
    %v166 = vunpack.c.l.b16 %v86
    %v167 = vunpack.c.l.b16 %v87
    %v168 = vunpack.c.l.b16 %v88
    %v169 = vunpack.c.l.b16 %v89
    %v170 = vunpack.c.l.b16 %v90
    %v171 = vunpack.c.l.b16 %v91
    %v172 = vunpack.c.l.b16 %v92
    %v173 = vunpack.c.l.b16 %v93
    %v174 = vunpack.c.l.b16 %v94
    %v175 = vunpack.c.l.b16 %v95
    %v176 = vunpack.c.l.b16 %v96
    %v177 = vpack.c.b16 %v162, %v161
    %v178 = vpack.c.b16 %v164, %v163
    %v179 = vpack.c.b16 %v166, %v165
    %v180 = vpack.c.b16 %v168, %v167
    %v181 = vpack.c.b16 %v170, %v169
    %v182 = vpack.c.b16 %v172, %v171
    %v183 = vpack.c.b16 %v174, %v173
    %v184 = vpack.c.b16 %v176, %v175
    %193 = vmatpush.bf16.msra.mxu0 %v184
    %194 = vmatpush.bf16.msra.mxu0 %v183
    %195 = vmatpush.bf16.msra.mxu0 %v182
    %196 = vmatpush.bf16.msra.mxu0 %v181
    %197 = vmatpush.bf16.msra.mxu0 %v180
    %198 = vmatpush.bf16.msra.mxu0 %v179
    %199 = vmatpush.bf16.msra.mxu0 %v178
    %200 = vmatpush.bf16.msra.mxu0 %v177
    %201 = vmatmul.bf16.gmra.mxu0 %v129
    %v202 = vpop.f32.mrf.mxu0
    %v203 = vadd.f32 0.0, %v202
    %v204 = vpop.f32.mrf.mxu0
    %v205 = vadd.f32 0.0, %v204
    %206 = vmatmul.bf16.gmra.mxu0 %v130
    %v207 = vpop.f32.mrf.mxu0
    %v208 = vadd.f32 0.0, %v207
    %v209 = vpop.f32.mrf.mxu0
    %v210 = vadd.f32 0.0, %v209
    %211 = vmatmul.bf16.gmra.mxu0 %v131
    %v212 = vpop.f32.mrf.mxu0
    %v213 = vadd.f32 0.0, %v212
    %v214 = vpop.f32.mrf.mxu0
    %v215 = vadd.f32 0.0, %v214
    %216 = vmatmul.bf16.gmra.mxu0 %v132
    %v217 = vpop.f32.mrf.mxu0
    %v218 = vadd.f32 0.0, %v217
    %v219 = vpop.f32.mrf.mxu0
    %v220 = vadd.f32 0.0, %v219
    %221 = vmatmul.bf16.gmra.mxu0 %v133
    %v222 = vpop.f32.mrf.mxu0
    %v223 = vadd.f32 0.0, %v222
    %v224 = vpop.f32.mrf.mxu0
    %v225 = vadd.f32 0.0, %v224
    %226 = vmatmul.bf16.gmra.mxu0 %v134
    %v227 = vpop.f32.mrf.mxu0
    %v228 = vadd.f32 0.0, %v227
    %v229 = vpop.f32.mrf.mxu0
    %v230 = vadd.f32 0.0, %v229
    %231 = vmatmul.bf16.gmra.mxu0 %v135
    %v232 = vpop.f32.mrf.mxu0
    %v233 = vadd.f32 0.0, %v232
    %v234 = vpop.f32.mrf.mxu0
    %v235 = vadd.f32 0.0, %v234
    %236 = vmatmul.bf16.gmra.mxu0 %v136
    %v237 = vpop.f32.mrf.mxu0
    %v238 = vadd.f32 0.0, %v237
    %v239 = vpop.f32.mrf.mxu0
    %v240 = vadd.f32 0.0, %v239
    %241 = vdwg.mxu0
    %v242 = vpack.c.bf16 %v205, %v203
    %v243 = vpack.c.bf16 %v210, %v208
    %v244 = vpack.c.bf16 %v215, %v213
    %v245 = vpack.c.bf16 %v220, %v218
    %v246 = vpack.c.bf16 %v225, %v223
    %v247 = vpack.c.bf16 %v230, %v228
    %v248 = vpack.c.bf16 %v235, %v233
    %v249 = vpack.c.bf16 %v240, %v238
    %v250 = vld [vmem:[#allocation7] sm:$0xf]
    %v251 = vld [vmem:[#allocation7 + $0x4] sm:$0xf]
    %v252 = vld [vmem:[#allocation7 + $0x8] sm:$0xf]
    %v253 = vld [vmem:[#allocation7 + $0xc] sm:$0xf]
    %v254 = vld [vmem:[#allocation7 + $0x10] sm:$0xf]
    %v255 = vld [vmem:[#allocation7 + $0x14] sm:$0xf]
    %v256 = vld [vmem:[#allocation7 + $0x18] sm:$0xf]
    %v257 = vld [vmem:[#allocation7 + $0x1c] sm:$0xf]
    %v258 = vld [vmem:[#allocation7 + $0x20] sm:$0xf]
    %v259 = vld [vmem:[#allocation7 + $0x24] sm:$0xf]
    %v260 = vld [vmem:[#allocation7 + $0x28] sm:$0xf]
    %v261 = vld [vmem:[#allocation7 + $0x2c] sm:$0xf]
    %v262 = vld [vmem:[#allocation7 + $0x30] sm:$0xf]
    %v263 = vld [vmem:[#allocation7 + $0x34] sm:$0xf]
    %v264 = vld [vmem:[#allocation7 + $0x38] sm:$0xf]
    %v265 = vld [vmem:[#allocation7 + $0x3c] sm:$0xf]
    %v266 = vld [vmem:[%s3] sm:$0x1]
    %v268 = vperm.slane %v266, 0
    %v286 = vunpack.c.l.b16 %v250
    %v287 = vunpack.c.l.b16 %v251
    %v288 = vunpack.c.l.b16 %v252
    %v289 = vunpack.c.l.b16 %v253
    %v290 = vunpack.c.l.b16 %v254
    %v291 = vunpack.c.l.b16 %v255
    %v292 = vunpack.c.l.b16 %v256
    %v293 = vunpack.c.l.b16 %v257
    %v294 = vunpack.c.l.b16 %v258
    %v295 = vunpack.c.l.b16 %v259
    %v296 = vunpack.c.l.b16 %v260
    %v297 = vunpack.c.l.b16 %v261
    %v298 = vunpack.c.l.b16 %v262
    %v299 = vunpack.c.l.b16 %v263
    %v300 = vunpack.c.l.b16 %v264
    %v301 = vunpack.c.l.b16 %v265
    %v302 = vpack.c.b16 %v287, %v286
    %v303 = vpack.c.b16 %v289, %v288
    %v304 = vpack.c.b16 %v291, %v290
    %v305 = vpack.c.b16 %v293, %v292
    %v306 = vpack.c.b16 %v295, %v294
    %v307 = vpack.c.b16 %v297, %v296
    %v308 = vpack.c.b16 %v299, %v298
    %v309 = vpack.c.b16 %v301, %v300
    %318 = vmatpush.bf16.msra.mxu0 %v309
    %319 = vmatpush.bf16.msra.mxu0 %v308
    %320 = vmatpush.bf16.msra.mxu0 %v307
    %321 = vmatpush.bf16.msra.mxu0 %v306
    %322 = vmatpush.bf16.msra.mxu0 %v305
    %323 = vmatpush.bf16.msra.mxu0 %v304
    %324 = vmatpush.bf16.msra.mxu0 %v303
    %325 = vmatpush.bf16.msra.mxu0 %v302
    %326 = vmatmul.bf16.gmra.mxu0 %v242
    %v327 = vpop.f32.mrf.mxu0
    %v328 = vadd.f32 %v268, %v327
    %v329 = vpop.f32.mrf.mxu0
    %v330 = vadd.f32 %v268, %v329
    %331 = vmatmul.bf16.gmra.mxu0 %v243
    %v332 = vpop.f32.mrf.mxu0
    %v333 = vadd.f32 %v268, %v332
    %v334 = vpop.f32.mrf.mxu0
    %v335 = vadd.f32 %v268, %v334
    %336 = vmatmul.bf16.gmra.mxu0 %v244
    %v337 = vpop.f32.mrf.mxu0
    %v338 = vadd.f32 %v268, %v337
    %v339 = vpop.f32.mrf.mxu0
    %v340 = vadd.f32 %v268, %v339
    %341 = vmatmul.bf16.gmra.mxu0 %v245
    %v342 = vpop.f32.mrf.mxu0
    %v343 = vadd.f32 %v268, %v342
    %v344 = vpop.f32.mrf.mxu0
    %v345 = vadd.f32 %v268, %v344
    %346 = vmatmul.bf16.gmra.mxu0 %v246
    %v347 = vpop.f32.mrf.mxu0
    %v348 = vadd.f32 %v268, %v347
    %v349 = vpop.f32.mrf.mxu0
    %v350 = vadd.f32 %v268, %v349
    %351 = vmatmul.bf16.gmra.mxu0 %v247
    %v352 = vpop.f32.mrf.mxu0
    %v353 = vadd.f32 %v268, %v352
    %v354 = vpop.f32.mrf.mxu0
    %v355 = vadd.f32 %v268, %v354
    %356 = vmatmul.bf16.gmra.mxu0 %v248
    %v357 = vpop.f32.mrf.mxu0
    %v358 = vadd.f32 %v268, %v357
    %v359 = vpop.f32.mrf.mxu0
    %v360 = vadd.f32 %v268, %v359
    %361 = vmatmul.bf16.gmra.mxu0 %v249
    %v362 = vpop.f32.mrf.mxu0
    %v363 = vadd.f32 %v268, %v362
    %v364 = vpop.f32.mrf.mxu0
    %v365 = vadd.f32 %v268, %v364
    %366 = vdwg.mxu0
    %v367 = vmax.f32 %v328, 0.0
    %v368 = vmax.f32 %v330, 0.0
    %v369 = vmax.f32 %v333, 0.0
    %v370 = vmax.f32 %v335, 0.0
    %v371 = vmax.f32 %v338, 0.0
    %v372 = vmax.f32 %v340, 0.0
    %v373 = vmax.f32 %v343, 0.0
    %v374 = vmax.f32 %v345, 0.0
    %v375 = vmax.f32 %v348, 0.0
    %v376 = vmax.f32 %v350, 0.0
    %v377 = vmax.f32 %v353, 0.0
    %v378 = vmax.f32 %v355, 0.0
    %v379 = vmax.f32 %v358, 0.0
    %v380 = vmax.f32 %v360, 0.0
    %v381 = vmax.f32 %v363, 0.0
    %v382 = vmax.f32 %v365, 0.0
    %v383 = vpack.c.bf16 %v367, %v367
    %v384 = vpack.c.bf16 %v368, %v368
    %v385 = vpack.c.bf16 %v369, %v369
    %v386 = vpack.c.bf16 %v370, %v370
    %v387 = vpack.c.bf16 %v371, %v371
    %v388 = vpack.c.bf16 %v372, %v372
    %v389 = vpack.c.bf16 %v373, %v373
    %v390 = vpack.c.bf16 %v374, %v374
    %v391 = vpack.c.bf16 %v375, %v375
    %v392 = vpack.c.bf16 %v376, %v376
    %v393 = vpack.c.bf16 %v377, %v377
    %v394 = vpack.c.bf16 %v378, %v378
    %v395 = vpack.c.bf16 %v379, %v379
    %v396 = vpack.c.bf16 %v380, %v380
    %v397 = vpack.c.bf16 %v381, %v381
    %v398 = vpack.c.bf16 %v382, %v382
    %399 = vst [vmem:[#allocation8] sm:$0xf] %v383
    %400 = vst [vmem:[#allocation8 + $0x4] sm:$0xf] %v384
    %401 = vst [vmem:[#allocation8 + $0x8] sm:$0xf] %v385
    %402 = vst [vmem:[#allocation8 + $0xc] sm:$0xf] %v386
    %403 = vst [vmem:[#allocation8 + $0x10] sm:$0xf] %v387
    %404 = vst [vmem:[#allocation8 + $0x14] sm:$0xf] %v388
    %405 = vst [vmem:[#allocation8 + $0x18] sm:$0xf] %v389
    %406 = vst [vmem:[#allocation8 + $0x1c] sm:$0xf] %v390
    %407 = vst [vmem:[#allocation8 + $0x20] sm:$0xf] %v391
    %408 = vst [vmem:[#allocation8 + $0x24] sm:$0xf] %v392
    %409 = vst [vmem:[#allocation8 + $0x28] sm:$0xf] %v393
    %410 = vst [vmem:[#allocation8 + $0x2c] sm:$0xf] %v394
    %411 = vst [vmem:[#allocation8 + $0x30] sm:$0xf] %v395
    %412 = vst [vmem:[#allocation8 + $0x34] sm:$0xf] %v396
    %413 = vst [vmem:[#allocation8 + $0x38] sm:$0xf] %v397
    %414 = vst [vmem:[#allocation8 + $0x3c] sm:$0xf] %v398
    // Predicated region
    $region30: #{tpu_custom_call.1} parent=1 // pred_check
      _
    $region31: #{tpu_custom_call.1} parent=1 // pred_check_branch
      %416 = sbr.rel (0) target = $region33
    $region32: #{tpu_custom_call.1} parent=1 // pred_region
      %418 = vsyncadd [#allocation4], 0
      %s419 = sshll.u32 [#allocation8], 4
      %s420 = int_to_ptr.vmem [resolvable:$true] %s419
      %s421 = sshll.u32 %s4, 4
      %s422 = int_to_ptr.hbm [resolvable:$true] %s421
      %427 = dma.vmem_to_hbm [thread:$0]  %s420, 1024, %s422, [#allocation4], 64, 64, 4
    $region33: #{tpu_custom_call.1} parent=1 // pred_fallthru
      _
    // Predicated region
    $region34: #{tpu_custom_call.1} parent=1 // pred_check
      _
    $region35: #{tpu_custom_call.1} parent=1 // pred_check_branch
      %429 = sbr.rel (0) target = $region37
    $region36: #{tpu_custom_call.1} parent=1 // pred_region
      %431 = dma.done [#allocation4], 1024
    $region37: #{tpu_custom_call.1} parent=1 // pred_fallthru
      _
    %432 = vsyncpa [#allocation3], 1
    %433 = vsyncpa [#allocation6], 1
    %434 = vsyncpa [#allocation4], 1

</llo_original>
